<compile_context>
chip_gen: v7x
topology: tpu7x:2x2x1
jax: 0.10.0
libtpu: 0.0.40
codegen_flags: <defaults>
</compile_context>

<pallas_src>
import math
from functools import partial

import numpy as np
import jax
import jax.numpy as jnp
from jax.experimental import pallas as pl
from jax.experimental.pallas import tpu as pltpu

# bf16 MXU inputs (f32 accumulation) for the attention matmuls: v6e/v7x MXUs
# are bf16-native; element-wise softmax math stays f32 for v5e's VPU/EUP.
_MXU_DTYPE = jnp.bfloat16


# --------------------------------------------------------------------------
# Relative position tables (static gather -> done at trace time with numpy)
# --------------------------------------------------------------------------
def get_rel_pos(q_size, k_size, rel_pos):
    """JAX port of get_rel_pos.  The module builds rel_pos tables with first
    dim == 2*max(q,k)-1, so `_interpolate(rel_pos, d)` is the identity and is
    omitted here (table length already matches).  np truncation matches torch
    .long() (both truncate toward zero)."""
    q_ratio = max(k_size / q_size, 1.0)
    k_ratio = max(q_size / k_size, 1.0)
    dist = (np.arange(q_size, dtype=np.float64)[:, None] * q_ratio
            - (np.arange(k_size, dtype=np.float64)[None, :] + (1.0 - k_size)) * k_ratio)
    idx = dist.astype(np.int64)
    return rel_pos[idx]          # (q_size, k_size, head_dim)


def rel_pos_factors(q4, q_thw, kv_thw, rel_pos_t, rel_pos_h, rel_pos_w, num_heads):
    """Small decomposed rel-pos factors, concatenated along the key-axis
    factors:  (B, H, Nq, k_t + k_h + k_w).  This is what the attention kernel
    expands on the fly -- the full (B, H, Nq, Nk) bias never hits HBM."""
    q_t, q_h, q_w = q_thw
    k_t, k_h, k_w = kv_thw
    B = q4.shape[0]
    hd = q4.shape[-1]
    Rt = get_rel_pos(q_t, k_t, rel_pos_t)   # (q_t, k_t, hd)  (pad=False path)
    Rh = get_rel_pos(q_h, k_h, rel_pos_h)   # (q_h, k_h, hd)
    Rw = get_rel_pos(q_w, k_w, rel_pos_w)   # (q_w, k_w, hd)
    qr = q4.reshape(B, q_t, q_h, q_w, num_heads, hd)
    rel_t = jnp.einsum('bthwnc,tkc->bnthwk', qr, Rt)   # (B,H,qt,qh,qw,kt)
    rel_h = jnp.einsum('bthwnc,hkc->bnthwk', qr, Rh)
    rel_w = jnp.einsum('bthwnc,wkc->bnthwk', qr, Rw)
    Nq = q_t * q_h * q_w
    return jnp.concatenate(
        [rel_t.reshape(B, num_heads, Nq, k_t),
         rel_h.reshape(B, num_heads, Nq, k_h),
         rel_w.reshape(B, num_heads, Nq, k_w)], axis=-1)


def make_bias_expansion(kv_thw):
    """Static 0/1 matrix E of shape (k_t+k_h+k_w, Nk) such that
    rel_factors @ E == decomposed rel-pos bias (broadcast-add over t/h/w)."""
    k_t, k_h, k_w = kv_thw
    Nk = k_t * k_h * k_w
    R = k_t + k_h + k_w
    E = np.zeros((R, Nk), np.float32)
    j = np.arange(Nk)
    E[j // (k_h * k_w), j] = 1.0                 # t factor
    E[k_t + (j // k_w) % k_h, j] = 1.0           # h factor
    E[k_t + k_h + (j % k_w), j] = 1.0            # w factor
    return E


# --------------------------------------------------------------------------
# Reference-only: full bias materialization (independent of the E-expansion)
# --------------------------------------------------------------------------
def decomposed_rel_pos_bias_3d(q4, q_thw, kv_thw, rel_pos_t, rel_pos_h,
                               rel_pos_w, num_heads):
    q_t, q_h, q_w = q_thw
    k_t, k_h, k_w = kv_thw
    B = q4.shape[0]
    hd = q4.shape[-1]
    Rt = get_rel_pos(q_t, k_t, rel_pos_t)
    Rh = get_rel_pos(q_h, k_h, rel_pos_h)
    Rw = get_rel_pos(q_w, k_w, rel_pos_w)
    qr = q4.reshape(B, q_t, q_h, q_w, num_heads, hd)
    rel_t = jnp.einsum('bthwnc,tkc->bnthwk', qr, Rt, precision='highest')
    rel_h = jnp.einsum('bthwnc,hkc->bnthwk', qr, Rh, precision='highest')
    rel_w = jnp.einsum('bthwnc,wkc->bnthwk', qr, Rw, precision='highest')
    bias = (rel_t[:, :, :, :, :, :, None, None]
            + rel_h[:, :, :, :, :, None, :, None]
            + rel_w[:, :, :, :, :, None, None, :])
    return bias.reshape(B, num_heads, q_t * q_h * q_w, k_t * k_h * k_w)


# --------------------------------------------------------------------------
# Pallas kernel: Linear (x @ W + b), tiled over M, weights resident
# --------------------------------------------------------------------------
def _linear_kernel(x_ref, w_ref, b_ref, o_ref):
    o_ref[...] = (jnp.dot(x_ref[...], w_ref[...],
                          preferred_element_type=jnp.float32)
                  + b_ref[...]).astype(o_ref.dtype)


def pallas_linear(x2d, w, b, *, tile_m=512):
    """x2d: (M, Cin), w: (Cin, Cout) (== PyTorch weight.T), b: (Cout,)."""
    M, Cin = x2d.shape
    Cout = w.shape[1]
    tm = min(tile_m, M)
    return pl.pallas_call(
        _linear_kernel,
        out_shape=jax.ShapeDtypeStruct((M, Cout), x2d.dtype),
        grid=(pl.cdiv(M, tm),),
        in_specs=[
            pl.BlockSpec((tm, Cin), lambda i: (i, 0)),
            pl.BlockSpec((Cin, Cout), lambda i: (0, 0)),   # weight resident
            pl.BlockSpec((1, Cout), lambda i: (0, 0)),     # bias resident
        ],
        out_specs=pl.BlockSpec((tm, Cout), lambda i: (i, 0)),
        compiler_params=pltpu.CompilerParams(
            dimension_semantics=("parallel",)),
    )(x2d, w, b.reshape(1, Cout))


# --------------------------------------------------------------------------
# Pallas kernel: biased attention, all heads of one batch item per grid step
# --------------------------------------------------------------------------
def _attn_kernel(q_ref, k_ref, v_ref, rel_ref, e_ref, o_ref, *,
                 num_heads, head_dim, scale):
    # q_ref/o_ref: (1, Nq, C), k_ref/v_ref: (1, Nk, C),
    # rel_ref: (1, H, Nq, R), e_ref: (R, Nk)   with C = H * head_dim.
    e = e_ref[...]                                        # (R, Nk) f32
    for h in range(num_heads):                            # small static loop
        lo = h * head_dim
        hi = lo + head_dim
        # fold the softmax scale into q (Nq*hd muls instead of Nq*Nk)
        q = (q_ref[0, :, lo:hi] * scale).astype(_MXU_DTYPE)   # (Nq, hd)
        k = k_ref[0, :, lo:hi].astype(_MXU_DTYPE)             # (Nk, hd)
        v = v_ref[0, :, lo:hi].astype(_MXU_DTYPE)             # (Nk, hd)

        # rel-pos bias expanded on the MXU: (Nq, R) @ (R, Nk) -> (Nq, Nk)
        bias = jnp.dot(rel_ref[0, h], e, preferred_element_type=jnp.float32)

        # scores = q_scaled @ k^T + bias (contract on head_dim)
        s = jax.lax.dot_general(q, k, (((1,), (1,)), ((), ())),
                                preferred_element_type=jnp.float32) + bias

        # softmax in f32 (VPU/EUP), normalize after PV with approx reciprocal
        m = jnp.max(s, axis=-1, keepdims=True)
        p = jnp.exp(s - m)
        denom = jnp.sum(p, axis=-1, keepdims=True)
        o = jnp.dot(p.astype(_MXU_DTYPE), v,
                    preferred_element_type=jnp.float32)
        o = o * pl.reciprocal(denom, approx=True)
        o_ref[0, :, lo:hi] = o.astype(o_ref.dtype)


def pallas_attention(q, k, v, rel, e_mat, num_heads, head_dim, scale):
    """q: (B, Nq, C), k/v: (B, Nk, C), rel: (B, H, Nq, R), e_mat: (R, Nk)."""
    B, Nq, C = q.shape
    Nk = k.shape[1]
    R = rel.shape[-1]
    return pl.pallas_call(
        partial(_attn_kernel, num_heads=num_heads, head_dim=head_dim,
                scale=scale),
        out_shape=jax.ShapeDtypeStruct((B, Nq, C), q.dtype),
        grid=(B,),
        in_specs=[
            pl.BlockSpec((1, Nq, C), lambda b: (b, 0, 0)),
            pl.BlockSpec((1, Nk, C), lambda b: (b, 0, 0)),
            pl.BlockSpec((1, Nk, C), lambda b: (b, 0, 0)),
            pl.BlockSpec((1, num_heads, Nq, R), lambda b: (b, 0, 0, 0)),
            pl.BlockSpec((R, Nk), lambda b: (0, 0)),       # resident constant
        ],
        out_specs=pl.BlockSpec((1, Nq, C), lambda b: (b, 0, 0)),
        compiler_params=pltpu.CompilerParams(
            dimension_semantics=("parallel",)),
    )(q, k, v, rel, e_mat)


# --------------------------------------------------------------------------
# Full CrossAttention3D forward
# --------------------------------------------------------------------------
def cross_attention_3d(q, kv, params, q_thw, kv_thw, num_heads):
    B, Nq, C = q.shape
    Nk = kv.shape[1]
    hd = C // num_heads

    # fused K+V projection (one pass over kv) + Q projection (Pallas matmuls)
    w_kv = jnp.concatenate([params["wk"], params["wv"]], axis=1)   # (C, 2C)
    b_kv = jnp.concatenate([params["bk"], params["bv"]], axis=0)   # (2C,)
    kv_p = pallas_linear(kv.reshape(B * Nk, C), w_kv, b_kv)        # (B*Nk, 2C)
    k_p = kv_p[:, :C].reshape(B, Nk, C)
    v_p = kv_p[:, C:].reshape(B, Nk, C)
    q_p = pallas_linear(q.reshape(B * Nq, C),
                        params["wq"], params["bq"]).reshape(B, Nq, C)

    # small rel-pos factors (B, H, Nq, k_t+k_h+k_w) + static expansion matrix
    rel = rel_pos_factors(q_p.reshape(B, Nq, num_heads, hd), q_thw, kv_thw,
                          params["rel_pos_t"], params["rel_pos_h"],
                          params["rel_pos_w"], num_heads)
    e_mat = jnp.asarray(make_bias_expansion(kv_thw))               # (R, Nk)

    # attention (Pallas kernel), all heads per batch item, channels-last layout
    scale = 1.0 / math.sqrt(hd)  # xformers default softmax scale
    x = pallas_attention(q_p, k_p, v_p, rel, e_mat, num_heads, hd, scale)

    # output projection (Pallas matmul kernel)
    out = pallas_linear(x.reshape(B * Nq, C), params["wo"], params["bo"])
    return out.reshape(B, Nq, C)


# --------------------------------------------------------------------------
# Pure-JAX reference for a correctness sanity check
# --------------------------------------------------------------------------
def reference(q, kv, params, q_thw, kv_thw, num_heads):
    B, Nq, C = q.shape
    Nk = kv.shape[1]
    hd = C // num_heads
    hp = jax.lax.Precision.HIGHEST
    q_p = jnp.dot(q, params["wq"], precision=hp) + params["bq"]
    k_p = jnp.dot(kv, params["wk"], precision=hp) + params["bk"]
    v_p = jnp.dot(kv, params["wv"], precision=hp) + params["bv"]
    q4 = q_p.reshape(B, Nq, num_heads, hd)
    k4 = k_p.reshape(B, Nk, num_heads, hd)
    v4 = v_p.reshape(B, Nk, num_heads, hd)
    bias = decomposed_rel_pos_bias_3d(q4, q_thw, kv_thw,
                                      params["rel_pos_t"],
                                      params["rel_pos_h"],
                                      params["rel_pos_w"], num_heads)
    scale = 1.0 / math.sqrt(hd)
    s = jnp.einsum('bqhc,bkhc->bhqk', q4, k4, precision=hp) * scale + bias
    p = jax.nn.softmax(s, axis=-1)
    o = jnp.einsum('bhqk,bkhc->bqhc', p, v4, precision=hp).reshape(B, Nq, C)
    return jnp.dot(o, params["wo"], precision=hp) + params["bo"]


# --------------------------------------------------------------------------
if __name__ == "__main__":
    B = 2
    dim = 32
    num_heads = 4
    head_dim = dim // num_heads                  # 8
    q_thw = (2, 4, 4)                            # Nq = 32
    kv_thw = (2, 2, 2)                           # Nk = 8
    Nq = q_thw[0] * q_thw[1] * q_thw[2]
    Nk = kv_thw[0] * kv_thw[1] * kv_thw[2]

    key = jax.random.PRNGKey(0)
    ks = jax.random.split(key, 13)

    q_in = jax.random.normal(ks[0], (B, Nq, dim), jnp.float32)
    k_in = jax.random.normal(ks[1], (B, Nk, dim), jnp.float32)

    def lin_init(kw, kb):
        # weight stored as (Cin, Cout) == PyTorch weight.T, so y = x @ W + b
        w = jax.random.normal(kw, (dim, dim), jnp.float32) * (1.0 / math.sqrt(dim))
        b = jax.random.normal(kb, (dim,), jnp.float32) * 0.01
        return w, b

    wq, bq = lin_init(ks[2], ks[3])
    wk, bk = lin_init(ks[4], ks[5])
    wv, bv = lin_init(ks[6], ks[7])
    wo, bo = lin_init(ks[8], ks[9])

    params = dict(
        wq=wq, bq=bq, wk=wk, bk=bk, wv=wv, bv=bv, wo=wo, bo=bo,
        # nn.Parameter(torch.zeros(...)) in the module; use small random
        # values here so the rel-pos bias path is actually exercised.
        rel_pos_t=jax.random.normal(
            ks[10], (2 * max(q_thw[0], kv_thw[0]) - 1, head_dim), jnp.float32) * 0.02,
        rel_pos_h=jax.random.normal(
            ks[11], (2 * max(q_thw[1], kv_thw[1]) - 1, head_dim), jnp.float32) * 0.02,
        rel_pos_w=jax.random.normal(
            ks[12], (2 * max(q_thw[2], kv_thw[2]) - 1, head_dim), jnp.float32) * 0.02,
    )

    out = cross_attention_3d(q_in, k_in, params, q_thw, kv_thw, num_heads)
    out = jax.block_until_ready(out)

    ref = jax.block_until_ready(
        reference(q_in, k_in, params, q_thw, kv_thw, num_heads))
    assert out.shape == (B, Nq, dim)
    # bf16 MXU inputs in the attention kernel (f32 accumulate) vs f32-highest
    # reference -> small, bounded difference.
    assert np.allclose(np.asarray(out), np.asarray(ref), atol=2e-2, rtol=2e-2), (
        "mismatch: max abs err = %g"
        % float(np.max(np.abs(np.asarray(out) - np.asarray(ref)))))

    print("KERNEL_OK")
</pallas_src>

<mosaic_0001>
module attributes {stable_mosaic.version = 11 : i64} {
  func.func @_linear_kernel(%arg0: i32, %arg1: memref<16x32xf32, #tpu.memory_space<vmem>>, %arg2: memref<32x64xf32, #tpu.memory_space<vmem>>, %arg3: memref<1x64xf32, #tpu.memory_space<vmem>>, %arg4: memref<16x64xf32, #tpu.memory_space<vmem>>) attributes {dimension_semantics = [#tpu.dimension_semantics<parallel>], iteration_bounds = array<i64: 1>, scalar_prefetch = 0 : i64, scratch_operands = 0 : i64, tpu.core_type = #tpu.core_type<tc>, window_params = [{transform_indices = @transform_0, window_bounds = array<i64: 16, 32>}, {pipeline_mode = #tpu.pipeline_mode<synchronous>, transform_indices = @transform_1, window_bounds = array<i64: 32, 64>}, {pipeline_mode = #tpu.pipeline_mode<synchronous>, transform_indices = @transform_2, window_bounds = array<i64: 1, 64>}, {transform_indices = @transform_3, window_bounds = array<i64: 16, 64>}]} {
    %c0 = arith.constant 0 : index
    %c0_0 = arith.constant 0 : index
    %0 = vector.load %arg1[%c0, %c0_0] : memref<16x32xf32, #tpu.memory_space<vmem>>, vector<16x32xf32>
    %c0_1 = arith.constant 0 : index
    %c0_2 = arith.constant 0 : index
    %1 = vector.load %arg2[%c0_1, %c0_2] : memref<32x64xf32, #tpu.memory_space<vmem>>, vector<32x64xf32>
    %cst = arith.constant dense<0.000000e+00> : vector<16x64xf32>
    %2 = tpu.matmul %0, %1, %cst {dimension_numbers = #tpu.dot_dimension_numbers<[1], [0], [0], [1], [0, 0, 1, 1], [], []>} : vector<16x32xf32>, vector<32x64xf32>, vector<16x64xf32> -> vector<16x64xf32>
    %c0_3 = arith.constant 0 : index
    %c0_4 = arith.constant 0 : index
    %3 = vector.load %arg3[%c0_3, %c0_4] : memref<1x64xf32, #tpu.memory_space<vmem>>, vector<1x64xf32>
    %4 = vector.broadcast %3 : vector<1x64xf32> to vector<16x64xf32>
    %5 = arith.addf %2, %4 : vector<16x64xf32>
    %c0_5 = arith.constant 0 : index
    %c0_6 = arith.constant 0 : index
    %6 = vector.load %arg4[%c0_5, %c0_6] : memref<16x64xf32, #tpu.memory_space<vmem>>, vector<16x64xf32>
    tpu.vector_store %arg4[%c0_5, %c0_6], %5 {strides = array<i32>} : memref<16x64xf32, #tpu.memory_space<vmem>>, vector<16x64xf32>,
    return
  }
  func.func @transform_0(%arg0: i32) -> (i32, i32) {
    %c0_i32 = arith.constant 0 : i32
    %c0_i32_0 = arith.constant 0 : i32
    return %arg0, %c0_i32 : i32, i32
  }
  func.func @transform_1(%arg0: i32) -> (i32, i32) {
    %c0_i32 = arith.constant 0 : i32
    %c0_i32_0 = arith.constant 0 : i32
    %c0_i32_1 = arith.constant 0 : i32
    return %c0_i32, %c0_i32_0 : i32, i32
  }
  func.func @transform_2(%arg0: i32) -> (i32, i32) {
    %c0_i32 = arith.constant 0 : i32
    %c0_i32_0 = arith.constant 0 : i32
    %c0_i32_1 = arith.constant 0 : i32
    return %c0_i32, %c0_i32_0 : i32, i32
  }
  func.func @transform_3(%arg0: i32) -> (i32, i32) {
    %c0_i32 = arith.constant 0 : i32
    %c0_i32_0 = arith.constant 0 : i32
    return %arg0, %c0_i32 : i32, i32
  }
}

</mosaic_0001>

<llo_original>
// kernel: tpu_custom_call.1
$region0: #{tpu_custom_call.1}
  #allocation0 [shape = 'u32[]', space=smem, size = 0x4, offset = 0x4, fixed_abs, tag = 'smem constant byte address 0x4 - core index']
  #allocation1 [shape = 'u32[144,128]{1,0:T(1,128)}', space=vmem, size = 0x12000, scoped, tag = 'internal scratch']
  %s0 = inlined_call_operand.hbm [shape: f32[16,32], index: 0, kind: input, shape index: {}]
  %s1 = inlined_call_operand.hbm [shape: f32[32,64], index: 1, kind: input, shape index: {}]
  %s2 = inlined_call_operand.vmem [shape: f32[1,64], index: 2, kind: input, shape index: {}]
  %s3 = inlined_call_operand.hbm [shape: f32[16,64], index: 3, kind: output, shape index: {}]
  %s4 = sld [smem:[#allocation0]]
  $region30: #{tpu_custom_call.1} parent=0
    _
  %s6 = ssub.s32 1, %s4
  %s7 = scalar_select 0, %s6, %s4
  $region1: #{tpu_custom_call.1} parent=0
    #allocation2 [shape = 'u8[8192]{0}', space=vmem, size = 0x2000, scoped, tag = 'input window, operand 0, single buffered']
    #allocation3 [shape = 's32[1]{0}', space=sflag, size = 0x4, scoped, tag = 'scoped memory for tpu_custom_call.1']
    #allocation4 [shape = 's32[1]{0}', space=sflag, size = 0x4, scoped, tag = 'scoped memory for tpu_custom_call.1']
    #allocation5 [shape = 'u8[16384]{0}', space=vmem, size = 0x4000, scoped, tag = 'input window, operand 1, single buffered']
    #allocation6 [shape = 's32[1]{0}', space=sflag, size = 0x4, scoped, tag = 'scoped memory for tpu_custom_call.1']
    #allocation7 [shape = 'u8[8192]{0}', space=vmem, size = 0x2000, scoped, tag = 'output window, operand 0, single buffered']
    %8 = vsyncpa [#allocation3], 0
    %9 = vsyncpa [#allocation6], 0
    %10 = vsyncpa [#allocation4], 0
    // Predicated region
    $region2: #{tpu_custom_call.1} parent=1 // pred_check
      _
    $region3: #{tpu_custom_call.1} parent=1 // pred_check_branch
      %12 = sbr.rel (0) target = $region5
    $region4: #{tpu_custom_call.1} parent=1 // pred_region
      %s14 = ssub.s32 256, 256
      %15 = vsyncadd [#allocation3], %s14
      %s16 = sshll.u32 [#allocation2], 4
      %s17 = int_to_ptr.vmem [resolvable:$true] %s16
      %22 = dma.hbm_to_vmem [thread:$0]  %s0, 256, %s17, [#allocation3], 128, 128, 8
    $region5: #{tpu_custom_call.1} parent=1 // pred_fallthru
      _
    // Predicated region
    $region6: #{tpu_custom_call.1} parent=1 // pred_check
      _
    $region7: #{tpu_custom_call.1} parent=1 // pred_check_branch
      %24 = sbr.rel (0) target = $region9
    $region8: #{tpu_custom_call.1} parent=1 // pred_region
      %s26 = ssub.s32 512, 512
      %27 = vsyncadd [#allocation6], %s26
      %s28 = sshll.u32 [#allocation5], 4
      %s29 = int_to_ptr.vmem [resolvable:$true] %s28
      %34 = dma.hbm_to_vmem [thread:$0]  %s1, 512, %s29, [#allocation6], 128, 128, 8
    $region9: #{tpu_custom_call.1} parent=1 // pred_fallthru
      _
    // Predicated region
    $region10: #{tpu_custom_call.1} parent=1 // pred_check
      _
    $region11: #{tpu_custom_call.1} parent=1 // pred_check_branch
      %36 = sbr.rel (0) target = $region13
    $region12: #{tpu_custom_call.1} parent=1 // pred_region
      _
    $region13: #{tpu_custom_call.1} parent=1 // pred_fallthru
      _
    // Predicated region
    $region14: #{tpu_custom_call.1} parent=1 // pred_check
      _
    $region15: #{tpu_custom_call.1} parent=1 // pred_check_branch
      %38 = sbr.rel (0) target = $region17
    $region16: #{tpu_custom_call.1} parent=1 // pred_region
      %39 = dma.done [#allocation3], 256
    $region17: #{tpu_custom_call.1} parent=1 // pred_fallthru
      _
    // Predicated region
    $region18: #{tpu_custom_call.1} parent=1 // pred_check
      _
    $region19: #{tpu_custom_call.1} parent=1 // pred_check_branch
      %41 = sbr.rel (0) target = $region21
    $region20: #{tpu_custom_call.1} parent=1 // pred_region
      %42 = dma.done [#allocation6], 512
    $region21: #{tpu_custom_call.1} parent=1 // pred_fallthru
      _
    %v43 = vld [vmem:[#allocation2] sm:$0xff]
    %v44 = vld [vmem:[#allocation2 + $0x8] sm:$0xff]
    %v45 = vld [vmem:[#allocation5] sm:$0xff]
    %v46 = vld [vmem:[#allocation5 + $0x8] sm:$0xff]
    %v47 = vld [vmem:[#allocation5 + $0x10] sm:$0xff]
    %v48 = vld [vmem:[#allocation5 + $0x18] sm:$0xff]
    %v49 = vld [vmem:[%s2] sm:$0x1]
    %v51 = vlaneseq
    %v52 = vshrl.u32 %v51, 7
    %v53 = vsub.s32 0, %v52
    %v54 = vrot.slane %v49, %v53
    %vm56 = vcmask 261120
    %v58 = vsel %vm56, %v43, 0
    %v61 = vsel %vm56, %v44, 0
    %63 = vmatprep.subr.mxu0 0.0
    %64 = vmatpush1.msra.mxu0 %v45
    %65 = vmatprep.subr.mxu0 0.0
    %66 = vmatpush1.msra.mxu0 %v46
    %67 = vmatprep.subr.mxu0 0.0
    %68 = vmatpush1.msra.mxu0 %v47
    %69 = vmatprep.subr.mxu0 0.0
    %70 = vmatpush1.msra.mxu0 %v48
    %71 = vmatprep.subr.mxu0 0.0
    %72 = vmatpush1.msra.mxu0 0.0
    %73 = vmatprep.subr.mxu0 0.0
    %74 = vmatpush1.msra.mxu0 0.0
    %75 = vmatprep.subr.mxu0 0.0
    %76 = vmatpush1.msra.mxu0 0.0
    %77 = vmatprep.subr.mxu0 0.0
    %78 = vmatpush1.msra.mxu0 0.0
    %79 = vmatprep.subr.mxu0 0.0
    %80 = vmatpush1.msra.mxu0 0.0
    %81 = vmatprep.subr.mxu0 0.0
    %82 = vmatpush1.msra.mxu0 0.0
    %83 = vmatprep.subr.mxu0 0.0
    %84 = vmatpush1.msra.mxu0 0.0
    %85 = vmatprep.subr.mxu0 0.0
    %86 = vmatpush1.msra.mxu0 0.0
    %87 = vmatprep.subr.mxu0 0.0
    %88 = vmatpush1.msra.mxu0 0.0
    %89 = vmatprep.subr.mxu0 0.0
    %90 = vmatpush1.msra.mxu0 0.0
    %91 = vmatprep.subr.mxu0 0.0
    %92 = vmatpush1.msra.mxu0 0.0
    %93 = vmatprep.subr.mxu0 0.0
    %94 = vmatpush1.msra.mxu0 0.0
    %95 = vmatprep.subr.mxu0 0.0
    %96 = vmatpush1.msra.mxu0 0.0
    %97 = vmatprep.subr.mxu0 0.0
    %98 = vmatpush1.msra.mxu0 0.0
    %99 = vmatprep.subr.mxu0 0.0
    %100 = vmatpush1.msra.mxu0 0.0
    %101 = vmatprep.subr.mxu0 0.0
    %102 = vmatpush1.msra.mxu0 0.0
    %103 = vmatprep.subr.mxu0 0.0
    %104 = vmatpush1.msra.mxu0 0.0
    %105 = vmatprep.subr.mxu0 0.0
    %106 = vmatpush1.msra.mxu0 0.0
    %107 = vmatprep.subr.mxu0 0.0
    %108 = vmatpush1.msra.mxu0 0.0
    %109 = vmatprep.subr.mxu0 0.0
    %110 = vmatpush1.msra.mxu0 0.0
    %111 = vmatprep.subr.mxu0 0.0
    %112 = vmatpush1.msra.mxu0 0.0
    %113 = vmatprep.subr.mxu0 0.0
    %114 = vmatpush1.msra.mxu0 0.0
    %115 = vmatprep.subr.mxu0 0.0
    %116 = vmatpush1.msra.mxu0 0.0
    %117 = vmatprep.subr.mxu0 0.0
    %118 = vmatpush1.msra.mxu0 0.0
    %119 = vmatprep.subr.mxu0 0.0
    %120 = vmatpush1.msra.mxu0 0.0
    %121 = vmatprep.subr.mxu0 0.0
    %122 = vmatpush1.msra.mxu0 0.0
    %123 = vmatprep.subr.mxu0 0.0
    %124 = vmatpush1.msra.mxu0 0.0
    %125 = vmatprep.subr.mxu0 0.0
    %126 = vmatpush1.msra.mxu0 0.0
    %127 = vmatprep.mubr.f32.mxu0 0.0
    %128 = vmatmul.mubr.f32.gmra.mrb[0].mxu0 %v58
    %v129 = vpop.f32.mrb[0].mxu0
    %v130 = vadd.f32 %v54, %v129
    %v131 = vpop.f32.mrb[0].mxu0
    %132 = vmatprep.mubr.f32.mxu0 0.0
    %133 = vmatmul.mubr.f32.gmra.mrb[0].mxu0 %v61
    %v134 = vpop.f32.mrb[0].mxu0
    %v135 = vadd.f32 %v54, %v134
    %v136 = vpop.f32.mrb[0].mxu0
    %137 = vdwg.mxu0
    %vm138 = vcmask 523264
    %139 = vst.msk [vmem:[#allocation7] sm:$0xff] %vm138, %v130
    %140 = vst.msk [vmem:[#allocation7 + $0x8] sm:$0xff] %vm138, %v135
    // Predicated region
    $region22: #{tpu_custom_call.1} parent=1 // pred_check
      _
    $region23: #{tpu_custom_call.1} parent=1 // pred_check_branch
      %142 = sbr.rel (0) target = $region25
    $region24: #{tpu_custom_call.1} parent=1 // pred_region
      %s144 = ssub.s32 256, 256
      %145 = vsyncadd [#allocation4], %s144
      %s146 = sshll.u32 [#allocation7], 4
      %s147 = int_to_ptr.vmem [resolvable:$true] %s146
      %152 = dma.vmem_to_hbm [thread:$0]  %s147, 256, %s3, [#allocation4], 128, 128, 8
    $region25: #{tpu_custom_call.1} parent=1 // pred_fallthru
      _
    // Predicated region
    $region26: #{tpu_custom_call.1} parent=1 // pred_check
      _
    $region27: #{tpu_custom_call.1} parent=1 // pred_check_branch
      %154 = sbr.rel (0) target = $region29
    $region28: #{tpu_custom_call.1} parent=1 // pred_region
      %155 = dma.done [#allocation4], 256
    $region29: #{tpu_custom_call.1} parent=1 // pred_fallthru
      _
    %156 = vsyncpa [#allocation3], 1
    %157 = vsyncpa [#allocation6], 1
    %158 = vsyncpa [#allocation4], 1

</llo_original>
